<compile_context>
chip_gen: v6e
topology: v6e:2x2x1
jax: 0.10.0
libtpu: 0.0.40
codegen_flags: <defaults>
</compile_context>

<pallas_src>
import jax
import jax.numpy as jnp
from jax.experimental import pallas as pl
from jax.experimental.pallas import tpu as pltpu


def _pick_tile_p(P, HW, itemsize, budget_bytes=2 << 20):
    """Planes per grid step.

    Whole tensor if small (one step); otherwise the largest multiple-of-8
    divisor of P whose block fits the budget (keeps the sublane block dim
    legal and leaves several grid steps for megacore parallelism).
    """
    if P * HW * itemsize <= budget_bytes:
        return P
    cap = max(8, (budget_bytes // max(1, HW * itemsize)) // 8 * 8)
    for t in range(min(cap, P), 0, -8):
        if P % t == 0 and t % 8 == 0:
            return t
    # TODO(synk): for very large planes (H*W*itemsize > budget) tile spatially
    # (row blocks with a 2-row halo) instead of whole planes.
    return P


def _make_tp_kernel(W, HW, PAD):
    """Kernel over a (TILE_P, H*W) block of flattened planes.

    A plane is flattened to f = i*W + j.  The six nonzero taps of the frozen
    weight become flat shifts s in {-W, -W+1, -1, +1, +W-1, +W}.  Row
    out-of-range reads land in the zero halo of the scratch buffer; column
    wrap-around (reading j-1 at j=0 or j+1 at j=W-1) is zeroed with masks.
    """

    def kernel(x_ref, o_ref, xt_ref):
        TP = o_ref.shape[0]
        f32 = jnp.float32

        # Zero halos (aligned splat stores; only the innermost W lanes of each
        # halo are ever read) and lane-aligned interior store of the block.
        xt_ref[:, :PAD] = jnp.zeros((TP, PAD), f32)
        xt_ref[:, PAD + HW:] = jnp.zeros((TP, PAD), f32)
        xt_ref[:, PAD:PAD + HW] = x_ref[...].astype(f32)

        def tap(s):  # x at flat offset f+s; zero when the source row is outside
            return xt_ref[:, PAD + s:PAD + HW + s]

        col = jax.lax.broadcasted_iota(jnp.int32, (TP, HW), 1) % W
        not_first = col != 0          # source column j-1 exists
        not_last = col != (W - 1)     # source column j+1 exists

        # Frozen weight [[0,1,1],[-1,0,1],[-1,-1,0]]:
        #   +x[i-1,j] +x[i-1,j+1] +x[i,j+1] -x[i,j-1] -x[i+1,j-1] -x[i+1,j]
        plus = tap(-W) + jnp.where(not_last, tap(-W + 1) + tap(1), 0.0)
        minus = tap(W) + jnp.where(not_first, tap(W - 1) + tap(-1), 0.0)
        o_ref[...] = (plus - minus).astype(o_ref.dtype)

    return kernel


def tp_module(x):
    """x: (N, 3, H, W) -> (N, 3, H, W), same semantics as the PyTorch module."""
    N, C, H, W = x.shape
    assert C == 3, "TP_module operates on exactly 3 channels"
    P, HW = N * C, H * W
    PAD = -(-W // 128) * 128            # halo >= W, 128-lane aligned
    TP = _pick_tile_p(P, HW, jnp.dtype(x.dtype).itemsize)

    xf = x.reshape(P, HW)               # free reshape: planes stay contiguous

    out_flat = pl.pallas_call(
        _make_tp_kernel(W, HW, PAD),
        out_shape=jax.ShapeDtypeStruct((P, HW), x.dtype),
        grid=(P // TP,),
        in_specs=[pl.BlockSpec((TP, HW), lambda p: (p, 0))],
        out_specs=pl.BlockSpec((TP, HW), lambda p: (p, 0)),
        scratch_shapes=[pltpu.VMEM((TP, PAD + HW + PAD), jnp.float32)],
        compiler_params=pltpu.CompilerParams(
            dimension_semantics=("parallel",)),
    )(xf)
    return out_flat.reshape(N, C, H, W)


def tp_reference(x, weight):
    """Pure-JAX reference (same semantics as F.conv2d with padding=1)."""
    N, C, H, W = x.shape
    xp = jnp.pad(x, ((0, 0), (0, 0), (1, 1), (1, 1)))
    out = jnp.zeros_like(x)
    for di in range(3):
        for dj in range(3):
            out = out + weight[di, dj] * xp[:, :, di:di + H, dj:dj + W]
    return out


if __name__ == "__main__":
    # Fixed kernel from the module's __init__ (requires_grad=False parameter);
    # used only by the reference to validate the specialized Pallas kernel.
    weight = jnp.array([[0.0, 1.0, 1.0],
                        [-1.0, 0.0, 1.0],
                        [-1.0, -1.0, 0.0]], dtype=jnp.float32)

    key = jax.random.PRNGKey(0)
    x = jax.random.normal(key, (2, 3, 16, 16), dtype=jnp.float32)

    out = tp_module(x)
    out = jax.block_until_ready(out)

    ref = tp_reference(x, weight)
    assert out.shape == (2, 3, 16, 16)
    assert jnp.allclose(out, ref, atol=1e-5, rtol=1e-5)

    print("KERNEL_OK")
</pallas_src>

<mosaic_0001>
module attributes {stable_mosaic.version = 11 : i64} {
  func.func @kernel(%arg0: i32, %arg1: memref<6x256xf32, #tpu.memory_space<vmem>>, %arg2: memref<6x256xf32, #tpu.memory_space<vmem>>, %arg3: memref<6x512xf32, #tpu.memory_space<vmem>>) attributes {dimension_semantics = [#tpu.dimension_semantics<parallel>], iteration_bounds = array<i64: 1>, scalar_prefetch = 0 : i64, scratch_operands = 1 : i64, tpu.core_type = #tpu.core_type<tc>, window_params = [{transform_indices = @transform_0, window_bounds = array<i64: 6, 256>}, {transform_indices = @transform_1, window_bounds = array<i64: 6, 256>}]} {
    %cst = arith.constant 0.000000e+00 : f32
    %0 = vector.broadcast %cst : f32 to vector<6x128xf32>
    %c0 = arith.constant 0 : index
    %c0_0 = arith.constant 0 : index
    %1 = vector.load %arg3[%c0, %c0_0] : memref<6x512xf32, #tpu.memory_space<vmem>>, vector<6x128xf32>
    tpu.vector_store %arg3[%c0, %c0_0], %0 {strides = array<i32>} : memref<6x512xf32, #tpu.memory_space<vmem>>, vector<6x128xf32>,
    %cst_1 = arith.constant 0.000000e+00 : f32
    %2 = vector.broadcast %cst_1 : f32 to vector<6x128xf32>
    %c0_2 = arith.constant 0 : index
    %c384 = arith.constant 384 : index
    %3 = vector.load %arg3[%c0_2, %c384] : memref<6x512xf32, #tpu.memory_space<vmem>>, vector<6x128xf32>
    tpu.vector_store %arg3[%c0_2, %c384], %2 {strides = array<i32>} : memref<6x512xf32, #tpu.memory_space<vmem>>, vector<6x128xf32>,
    %c0_3 = arith.constant 0 : index
    %c0_4 = arith.constant 0 : index
    %4 = vector.load %arg1[%c0_3, %c0_4] : memref<6x256xf32, #tpu.memory_space<vmem>>, vector<6x256xf32>
    %c0_5 = arith.constant 0 : index
    %c128 = arith.constant 128 : index
    %5 = vector.load %arg3[%c0_5, %c128] : memref<6x512xf32, #tpu.memory_space<vmem>>, vector<6x256xf32>
    tpu.vector_store %arg3[%c0_5, %c128], %4 {strides = array<i32>} : memref<6x512xf32, #tpu.memory_space<vmem>>, vector<6x256xf32>,
    %6 = tpu.iota {dimensions = array<i32: 1>} : vector<6x256xi32>
    %c16_i32 = arith.constant 16 : i32
    %c0_i32 = arith.constant 0 : i32
    %7 = arith.cmpi eq, %c16_i32, %c0_i32 : i32
    %c1_i32 = arith.constant 1 : i32
    %8 = arith.select %7, %c1_i32, %c16_i32 : i32
    %9 = vector.broadcast %8 : i32 to vector<6x256xi32>
    %10 = arith.remsi %6, %9 : vector<6x256xi32>
    %c0_i32_6 = arith.constant 0 : i32
    %11 = vector.broadcast %c0_i32_6 : i32 to vector<6x256xi32>
    %12 = arith.cmpi ne, %10, %11 : vector<6x256xi32>
    %c0_i32_7 = arith.constant 0 : i32
    %13 = vector.broadcast %c0_i32_7 : i32 to vector<6x256xi32>
    %14 = arith.cmpi slt, %10, %13 : vector<6x256xi32>
    %c0_i32_8 = arith.constant 0 : i32
    %15 = arith.cmpi slt, %8, %c0_i32_8 : i32
    %16 = vector.broadcast %15 : i1 to vector<6x256xi1>
    %17 = vector.broadcast %16 : vector<6x256xi1> to vector<6x256xi1>
    %18 = arith.xori %14, %17 : vector<6x256xi1>
    %19 = arith.andi %18, %12 : vector<6x256xi1>
    %20 = vector.broadcast %8 : i32 to vector<6x256xi32>
    %21 = arith.addi %10, %20 : vector<6x256xi32>
    %22 = arith.select %19, %21, %10 : vector<6x256xi1>, vector<6x256xi32>
    %c0_i32_9 = arith.constant 0 : i32
    %23 = vector.broadcast %c0_i32_9 : i32 to vector<6x256xi32>
    %24 = arith.cmpi ne, %22, %23 : vector<6x256xi32>
    %c15_i32 = arith.constant 15 : i32
    %25 = vector.broadcast %c15_i32 : i32 to vector<6x256xi32>
    %26 = arith.cmpi ne, %22, %25 : vector<6x256xi32>
    %c0_10 = arith.constant 0 : index
    %c112 = arith.constant 112 : index
    %27 = vector.load %arg3[%c0_10, %c112] : memref<6x512xf32, #tpu.memory_space<vmem>>, vector<6x256xf32>
    %c0_11 = arith.constant 0 : index
    %c113 = arith.constant 113 : index
    %28 = vector.load %arg3[%c0_11, %c113] : memref<6x512xf32, #tpu.memory_space<vmem>>, vector<6x256xf32>
    %c0_12 = arith.constant 0 : index
    %c129 = arith.constant 129 : index
    %29 = vector.load %arg3[%c0_12, %c129] : memref<6x512xf32, #tpu.memory_space<vmem>>, vector<6x256xf32>
    %30 = arith.addf %28, %29 : vector<6x256xf32>
    %cst_13 = arith.constant 0.000000e+00 : f32
    %31 = vector.broadcast %cst_13 : f32 to vector<6x256xf32>
    %32 = arith.select %26, %30, %31 : vector<6x256xi1>, vector<6x256xf32>
    %33 = arith.addf %27, %32 : vector<6x256xf32>
    %c0_14 = arith.constant 0 : index
    %c144 = arith.constant 144 : index
    %34 = vector.load %arg3[%c0_14, %c144] : memref<6x512xf32, #tpu.memory_space<vmem>>, vector<6x256xf32>
    %c0_15 = arith.constant 0 : index
    %c143 = arith.constant 143 : index
    %35 = vector.load %arg3[%c0_15, %c143] : memref<6x512xf32, #tpu.memory_space<vmem>>, vector<6x256xf32>
    %c0_16 = arith.constant 0 : index
    %c127 = arith.constant 127 : index
    %36 = vector.load %arg3[%c0_16, %c127] : memref<6x512xf32, #tpu.memory_space<vmem>>, vector<6x256xf32>
    %37 = arith.addf %35, %36 : vector<6x256xf32>
    %cst_17 = arith.constant 0.000000e+00 : f32
    %38 = vector.broadcast %cst_17 : f32 to vector<6x256xf32>
    %39 = arith.select %24, %37, %38 : vector<6x256xi1>, vector<6x256xf32>
    %40 = arith.addf %34, %39 : vector<6x256xf32>
    %41 = arith.subf %33, %40 : vector<6x256xf32>
    %c0_18 = arith.constant 0 : index
    %c0_19 = arith.constant 0 : index
    %42 = vector.load %arg2[%c0_18, %c0_19] : memref<6x256xf32, #tpu.memory_space<vmem>>, vector<6x256xf32>
    tpu.vector_store %arg2[%c0_18, %c0_19], %41 {strides = array<i32>} : memref<6x256xf32, #tpu.memory_space<vmem>>, vector<6x256xf32>,
    return
  }
  func.func @transform_0(%arg0: i32) -> (i32, i32) {
    %c0_i32 = arith.constant 0 : i32
    %c0_i32_0 = arith.constant 0 : i32
    return %arg0, %c0_i32 : i32, i32
  }
  func.func @transform_1(%arg0: i32) -> (i32, i32) {
    %c0_i32 = arith.constant 0 : i32
    %c0_i32_0 = arith.constant 0 : i32
    return %arg0, %c0_i32 : i32, i32
  }
}

</mosaic_0001>

<llo_original>
// kernel: tpu_custom_call.1
$region0: #{tpu_custom_call.1}
  #allocation0 [shape = 'u32[]', space=smem, size = 0x4, offset = 0x4, fixed_abs, tag = 'smem constant byte address 0x4 - core index']
  #allocation1 [shape = 'u32[144,128]{1,0:T(1,128)}', space=vmem, size = 0x12000, scoped, tag = 'internal scratch']
  #allocation2 [shape = 'f32[6,512]{1,0:T(8,128)}', space=vmem, size = 0x4000, scoped, tag = 'scratch operand']
  %s0 = inlined_call_operand.hbm [shape: f32[6,256], index: 0, kind: input, shape index: {}]
  %s1 = inlined_call_operand.hbm [shape: f32[6,256], index: 1, kind: output, shape index: {}]
  %s2 = sld [smem:[#allocation0]]
  $region18: #{tpu_custom_call.1} parent=0
    _
  %s4 = ssub.s32 1, %s2
  %s5 = scalar_select 0, %s4, %s2
  $region1: #{tpu_custom_call.1} parent=0
    #allocation3 [shape = 'u8[8192]{0}', space=vmem, size = 0x2000, scoped, tag = 'input window, operand 0, single buffered']
    #allocation4 [shape = 's32[1]{0}', space=sflag, size = 0x4, scoped, tag = 'scoped memory for tpu_custom_call.1']
    #allocation5 [shape = 's32[1]{0}', space=sflag, size = 0x4, scoped, tag = 'scoped memory for tpu_custom_call.1']
    #allocation6 [shape = 'u8[8192]{0}', space=vmem, size = 0x2000, scoped, tag = 'output window, operand 0, single buffered']
    %6 = vsyncpa [#allocation4], 0
    %7 = vsyncpa [#allocation5], 0
    // Predicated region
    $region2: #{tpu_custom_call.1} parent=1 // pred_check
      _
    $region3: #{tpu_custom_call.1} parent=1 // pred_check_branch
      %9 = sbr.rel (0) target = $region5
    $region4: #{tpu_custom_call.1} parent=1 // pred_region
      %s11 = ssub.s32 256, 256
      %12 = vsyncadd [#allocation4], %s11
      %s14 = sshll.u32 [#allocation3], 4
      %s15 = int_to_ptr.vmem [resolvable:$true] %s14
      %17 = dma.hbm_to_vmem [thread:$0]  %s0, 256, %s15, [#allocation4]
    $region5: #{tpu_custom_call.1} parent=1 // pred_fallthru
      _
    // Predicated region
    $region6: #{tpu_custom_call.1} parent=1 // pred_check
      _
    $region7: #{tpu_custom_call.1} parent=1 // pred_check_branch
      %19 = sbr.rel (0) target = $region9
    $region8: #{tpu_custom_call.1} parent=1 // pred_region
      %20 = dma.done [#allocation4], 256
    $region9: #{tpu_custom_call.1} parent=1 // pred_fallthru
      _
    %21 = vst [vmem:[#allocation2] sm:$0x3f] 0.0
    %22 = vst [vmem:[#allocation2 + $0x18] sm:$0x3f] 0.0
    %v23 = vld [vmem:[#allocation3] sm:$0x3f]
    %v24 = vld [vmem:[#allocation3 + $0x8] sm:$0x3f]
    %25 = vst [vmem:[#allocation2 + $0x8] sm:$0x3f] %v23
    %26 = vst [vmem:[#allocation2 + $0x10] sm:$0x3f] %v24
    %v27 = vlaneseq
    %v28 = vand.u32 %v27, 127
    %v29 = vadd.s32 %v28, 128
    %vm30 = vcmp.lt.s32.totalorder %v28, 0
    %v31 = vsub.s32 0, %v28
    %v32 = vsel %vm30, %v31, %v28
    %v33 = vshrl.u32 %v32, 4
    %v34 = vand.u32 %v32, 15
    %v35 = vsub.s32 0, %v34
    %v36 = vsel %vm30, %v35, %v34
    %vm37 = vcmp.lt.s32.totalorder %v29, 0
    %v38 = vsub.s32 0, %v29
    %v39 = vsel %vm37, %v38, %v29
    %v40 = vshrl.u32 %v39, 4
    %v41 = vand.u32 %v39, 15
    %v42 = vsub.s32 0, %v41
    %v43 = vsel %vm37, %v42, %v41
    %vm44 = vcmp.ne.s32.totalorder %v36, 0
    %vm45 = vcmp.ne.s32.totalorder %v43, 0
    %vm46 = vcmp.lt.s32.totalorder %v36, 0
    %vm47 = vcmp.lt.s32.totalorder %v43, 0
    %vm48 = vmand %vm46, %vm44
    %vm49 = vmand %vm47, %vm45
    %v50 = vadd.s32 %v36, 16
    %v51 = vadd.s32 %v43, 16
    %v52 = vsel %vm48, %v50, %v36
    %v53 = vsel %vm49, %v51, %v43
    %vm54 = vcmp.ne.s32.totalorder %v52, 0
    %vm55 = vcmp.ne.s32.totalorder %v53, 0
    %vm56 = vcmp.ne.s32.totalorder %v52, 15
    %vm57 = vcmp.ne.s32.totalorder %v53, 15
    %v58 = vld [vmem:[#allocation2] sm:$0x3f]
    %v59 = vld [vmem:[#allocation2 + $0x8] sm:$0x3f]
    %v60 = vld [vmem:[#allocation2 + $0x10] sm:$0x3f]
    %v61 = vld [vmem:[#allocation2 + $0x18] sm:$0x3f]
    %65 = vrot.lane.b32.xlu0 %v59, 112
    %v66 = vpop.permute.xlu0 %65
    %67 = vrot.lane.b32.xlu0 %v60, 112
    %v68 = vpop.permute.xlu0 %67
    %69 = vrot.lane.b32.xlu0 %v61, 112
    %v70 = vpop.permute.xlu0 %69
    %vm71 = vcmask 916480
    %v72 = vsel %vm71, %v66, %v68
    %v73 = vsel %vm71, %v68, %v70
    %v77 = vadd.f32 %v58, %v66
    %v78 = vadd.f32 %v59, %v72
    %v79 = vadd.f32 %v60, %v73
    %83 = vrot.lane.b32.xlu0 %v77, 15
    %v84 = vpop.permute.xlu0 %83
    %85 = vrot.lane.b32.xlu0 %v78, 15
    %v86 = vpop.permute.xlu0 %85
    %87 = vrot.lane.b32.xlu0 %v79, 15
    %v88 = vpop.permute.xlu0 %87
    %vm89 = vcmask 121856
    %v90 = vsel %vm89, %v84, %v86
    %v91 = vsel %vm89, %v86, %v88
    %v94 = vsel %vm56, %v90, 0.0
    %v95 = vsel %vm57, %v91, 0.0
    %98 = vrot.lane.b32.xlu0 %v94, 112
    %v99 = vpop.permute.xlu0 %98
    %100 = vrot.lane.b32.xlu0 %v95, 112
    %v101 = vpop.permute.xlu0 %100
    %v102 = vsel %vm71, %v99, %v101
    %v106 = vadd.f32 %v58, %v99
    %v107 = vadd.f32 %v59, %v102
    %v108 = vadd.f32 %v60, %v101
    %110 = vrot.lane.b32.xlu0 %v58, 16
    %v111 = vpop.permute.xlu0 %110
    %112 = vrot.lane.b32.xlu0 %v59, 16
    %v113 = vpop.permute.xlu0 %112
    %114 = vrot.lane.b32.xlu0 %v60, 16
    %v115 = vpop.permute.xlu0 %114
    %vm116 = vcmask 130048
    %v117 = vsel %vm116, %v111, %v113
    %v118 = vsel %vm116, %v113, %v115
    %v122 = vadd.f32 %v59, %v117
    %v123 = vadd.f32 %v60, %v118
    %v124 = vadd.f32 %v61, %v115
    %128 = vrot.lane.b32.xlu0 %v122, 113
    %v129 = vpop.permute.xlu0 %128
    %130 = vrot.lane.b32.xlu0 %v123, 113
    %v131 = vpop.permute.xlu0 %130
    %132 = vrot.lane.b32.xlu0 %v124, 113
    %v133 = vpop.permute.xlu0 %132
    %vm134 = vcmask 924672
    %v135 = vsel %vm134, %v129, %v131
    %v136 = vsel %vm134, %v131, %v133
    %v139 = vsel %vm54, %v135, 0.0
    %v140 = vsel %vm55, %v136, 0.0
    %143 = vrot.lane.b32.xlu0 %v139, 16
    %v144 = vpop.permute.xlu0 %143
    %145 = vrot.lane.b32.xlu0 %v140, 16
    %v146 = vpop.permute.xlu0 %145
    %v147 = vsel %vm116, %v144, %v146
    %v151 = vadd.f32 %v59, %v144
    %v152 = vadd.f32 %v60, %v147
    %v153 = vadd.f32 %v61, %v146
    %157 = vrot.lane.b32.xlu0 %v151, 96
    %v158 = vpop.permute.xlu0 %157
    %159 = vrot.lane.b32.xlu0 %v152, 96
    %v160 = vpop.permute.xlu0 %159
    %161 = vrot.lane.b32.xlu0 %v153, 96
    %v162 = vpop.permute.xlu0 %161
    %vm163 = vcmask 785408
    %v164 = vsel %vm163, %v158, %v160
    %v165 = vsel %vm163, %v160, %v162
    %v169 = vsub.f32 %v106, %v158
    %v170 = vsub.f32 %v107, %v164
    %v171 = vsub.f32 %v108, %v165
    %175 = vrot.lane.b32.xlu0 %v169, 16
    %v176 = vpop.permute.xlu0 %175
    %177 = vrot.lane.b32.xlu0 %v170, 16
    %v178 = vpop.permute.xlu0 %177
    %179 = vrot.lane.b32.xlu0 %v171, 16
    %v180 = vpop.permute.xlu0 %179
    %v181 = vsel %vm116, %v176, %v178
    %v182 = vsel %vm116, %v178, %v180
    %185 = vst [vmem:[#allocation6] sm:$0x3f] %v181
    %186 = vst [vmem:[#allocation6 + $0x8] sm:$0x3f] %v182
    // Predicated region
    $region10: #{tpu_custom_call.1} parent=1 // pred_check
      _
    $region11: #{tpu_custom_call.1} parent=1 // pred_check_branch
      %188 = sbr.rel (0) target = $region13
    $region12: #{tpu_custom_call.1} parent=1 // pred_region
      %s190 = ssub.s32 256, 256
      %191 = vsyncadd [#allocation5], %s190
      %s193 = sshll.u32 [#allocation6], 4
      %s194 = int_to_ptr.vmem [resolvable:$true] %s193
      %196 = dma.vmem_to_hbm [thread:$0]  %s194, 256, %s1, [#allocation5]
    $region13: #{tpu_custom_call.1} parent=1 // pred_fallthru
      _
    // Predicated region
    $region14: #{tpu_custom_call.1} parent=1 // pred_check
      _
    $region15: #{tpu_custom_call.1} parent=1 // pred_check_branch
      %198 = sbr.rel (0) target = $region17
    $region16: #{tpu_custom_call.1} parent=1 // pred_region
      %199 = dma.done [#allocation5], 256
    $region17: #{tpu_custom_call.1} parent=1 // pred_fallthru
      _
    %200 = vsyncpa [#allocation4], 1
    %201 = vsyncpa [#allocation5], 1

</llo_original>
